<compile_context>
chip_gen: v7x
topology: tpu7x:2x2x1
jax: 0.10.0
libtpu: 0.0.40
codegen_flags: <defaults>
</compile_context>

<pallas_src>
import functools
import math

import jax
import jax.numpy as jnp
from jax.experimental import pallas as pl
from jax.experimental.pallas import tpu as pltpu

_TWO_PI = 2.0 * math.pi
_PHI32 = 0x9E3779B9  # golden-ratio constant for seed mixing


def _seed_to_i32(seed):
    """Normalize seed (python int or traced int) to a (1,) int32 array."""
    if isinstance(seed, int):
        s = seed & 0xFFFFFFFF
        if s >= 1 << 31:
            s -= 1 << 32
        return jnp.full((1,), s, dtype=jnp.int32)
    return jnp.asarray(seed).astype(jnp.int32).reshape((1,))


@functools.lru_cache(maxsize=None)
def _make_kernel(mean, std, paired):
    """Kernel factory cached on the static hyper-params (NOT on the seed)."""

    def kernel(seed_ref, ctr_ref, x_ref, o_ref):
        block_rows, cols = ctr_ref.shape
        mean_f = jnp.float32(mean)
        std_f = jnp.float32(std)

        # Scalar per-block offset: global counter base mixed with the runtime
        # seed.  Scalar math only; a single vector add applies it.
        blk = pl.program_id(0)
        base = blk.astype(jnp.uint32) * jnp.uint32(block_rows * cols)
        offset = base + seed_ref[0].astype(jnp.uint32) * jnp.uint32(_PHI32)

        # splitmix32 finalizer on (hoisted counter + offset): pure VPU int ops.
        h = ctr_ref[...] + offset
        h = h ^ (h >> 16)
        h = h * jnp.uint32(0x85EBCA6B)
        h = h ^ (h >> 13)
        h = h * jnp.uint32(0xC2B2AE35)
        h = h ^ (h >> 16)

        # u1 in (0, 1] from the top 23 bits -> log/sqrt run on the EUP slot.
        u1 = ((h >> 9).astype(jnp.int32).astype(jnp.float32) + jnp.float32(1.0)) \
             * jnp.float32(1.0 / 8388608.0)
        r = jnp.sqrt(jnp.float32(-2.0) * jnp.log(u1)) * std_f  # std folded in

        if paired:
            # One hashed word + ONE cos polynomial covers two outputs:
            #   n1 = r*cos(theta),  n2 = r * (+-sqrt(1 - cos^2))
            theta = (h & jnp.uint32(0xFF)).astype(jnp.int32).astype(jnp.float32) \
                    * jnp.float32(_TWO_PI / 256.0)
            c = jnp.cos(theta)
            s = jnp.sqrt(jnp.maximum(jnp.float32(1.0) - c * c, jnp.float32(0.0)))
            s = jnp.where((h & jnp.uint32(0x100)) != jnp.uint32(0), s, -s)
            n1 = (r * c + mean_f).astype(o_ref.dtype)
            n2 = (r * s + mean_f).astype(o_ref.dtype)
            half = cols  # cols == lanes // 2 >= 128 -> unmasked lane-dense vst
            o_ref[:, :half] = x_ref[:, :half] + n1
            o_ref[:, half:] = x_ref[:, half:] + n2
        else:
            theta = (h & jnp.uint32(0x1FF)).astype(jnp.int32).astype(jnp.float32) \
                    * jnp.float32(_TWO_PI / 512.0)
            z = r * jnp.cos(theta) + mean_f
            o_ref[...] = x_ref[...] + z.astype(o_ref.dtype)

    return kernel


def _noise_2d(x2d, seed_arr, mean, std, target_block_bytes):
    """Add Gaussian noise to a lane-dense (rows, lanes) slab via Pallas."""
    rows, lanes = x2d.shape
    dtype = x2d.dtype
    itemsize = jnp.dtype(dtype).itemsize
    paired = (lanes % 256) == 0
    cols = lanes // 2 if paired else lanes  # hashed words per row

    # Sublane tile for this dtype: f32 -> 8, bf16 -> 16, int8/fp8 -> 32.
    sub = max(8, 32 // itemsize)

    target_rows = max(sub, (target_block_bytes // (lanes * itemsize)) // sub * sub)
    if rows <= sub:
        block_rows = rows  # full first dim (allowed: equals array dim)
    else:
        block_rows = min(rows, target_rows)
        if rows >= 2 * sub:
            # Keep >= 2 grid blocks so both v7x TensorCores get work.
            cap = pl.cdiv(pl.cdiv(rows, 2), sub) * sub
            block_rows = min(block_rows, cap)
        block_rows = max(sub, (block_rows // sub) * sub)
    grid_n = pl.cdiv(rows, block_rows)

    # Per-block counter pattern hoisted out of the kernel.  Its BlockSpec
    # index is constant, so it is DMA'd once and stays resident in VMEM.
    ctr0 = jnp.arange(block_rows * cols, dtype=jnp.uint32).reshape(block_rows, cols)

    kernel = _make_kernel(float(mean), float(std), paired)

    return pl.pallas_call(
        kernel,
        out_shape=jax.ShapeDtypeStruct((rows, lanes), dtype),
        grid_spec=pltpu.PrefetchScalarGridSpec(
            num_scalar_prefetch=1,           # seed lives in SMEM at runtime
            grid=(grid_n,),
            in_specs=[
                pl.BlockSpec((block_rows, cols), lambda i, seed: (0, 0)),   # ctr0
                pl.BlockSpec((block_rows, lanes), lambda i, seed: (i, 0)),  # x
            ],
            out_specs=pl.BlockSpec((block_rows, lanes), lambda i, seed: (i, 0)),
        ),
        compiler_params=pltpu.CompilerParams(
            dimension_semantics=("parallel",),
            vmem_limit_bytes=32 * 1024 * 1024,
        ),
    )(seed_arr, ctr0, x2d)


def _hash_normal_f32(start, count, seed_i32, mean, std):
    """Pure-jnp Box-Muller on hashed counters (tiny ragged-tail fallback)."""
    idx = jnp.arange(count, dtype=jnp.uint32) + jnp.uint32(start)
    h = idx + seed_i32.astype(jnp.uint32) * jnp.uint32(_PHI32)
    h = h ^ (h >> 16)
    h = h * jnp.uint32(0x85EBCA6B)
    h = h ^ (h >> 13)
    h = h * jnp.uint32(0xC2B2AE35)
    h = h ^ (h >> 16)
    u1 = ((h >> 9).astype(jnp.int32).astype(jnp.float32) + 1.0) * (1.0 / 8388608.0)
    theta = (h & jnp.uint32(0x1FF)).astype(jnp.int32).astype(jnp.float32) \
            * jnp.float32(_TWO_PI / 512.0)
    z = jnp.sqrt(jnp.float32(-2.0) * jnp.log(u1)) * jnp.cos(theta)
    return z * jnp.float32(std) + jnp.float32(mean)


def gaussian_noise(x, *, mean=0.0, std=0.1, training=True, seed=0,
                   target_block_bytes=2 << 20):
    """Pallas-TPU equivalent of GaussianNoise.forward for any-shaped float x."""
    if not training:
        return x

    orig_shape = x.shape
    dtype = x.dtype
    flat = x.reshape(-1)
    n = flat.shape[0]
    if n == 0:
        return x
    assert n < (1 << 32), "uint32 noise counter would wrap for >= 2^32 elements"

    seed_arr = _seed_to_i32(seed)

    # Lane-dense slab: prefer a wide last dim (512/256 enables the paired
    # Box-Muller path; 128 falls back to one cos per element).
    lanes = None
    for cand in (512, 256, 128):
        if n % cand == 0:
            lanes = cand
            break

    if lanes is not None:
        out2d = _noise_2d(flat.reshape(n // lanes, lanes), seed_arr, mean, std,
                          target_block_bytes)
        return out2d.reshape(orig_shape)

    # Ragged size: aligned prefix through the kernel, tiny (<512 elem) tail in
    # plain jnp.  Avoids pad + slice passes over the whole tensor.
    lanes = 512
    n_main = (n // lanes) * lanes
    pieces = []
    if n_main:
        main = _noise_2d(flat[:n_main].reshape(n_main // lanes, lanes),
                         seed_arr, mean, std, target_block_bytes)
        pieces.append(main.reshape(-1))
    tail = flat[n_main:]
    tail_noise = _hash_normal_f32(n_main, n - n_main, seed_arr[0], mean, std)
    pieces.append(tail + tail_noise.astype(dtype))
    out = jnp.concatenate(pieces) if len(pieces) > 1 else pieces[0]
    return out.reshape(orig_shape)


if __name__ == "__main__":
    key = jax.random.PRNGKey(0)

    # Shape implied by the module: NCHW activations.
    x = jax.random.normal(key, (2, 4, 16, 16), dtype=jnp.float32)

    # Training mode: adds Gaussian noise (std=0.1, mean=0.0).
    y = jax.block_until_ready(
        gaussian_noise(x, mean=0.0, std=0.1, training=True, seed=1234))
    assert y.shape == x.shape and y.dtype == x.dtype
    resid = y - x
    assert float(jnp.max(jnp.abs(resid))) > 0.0
    assert 0.05 < float(jnp.std(resid)) < 0.2
    assert abs(float(jnp.mean(resid))) < 0.03

    # New seed at runtime reuses the same compiled kernel, different stream.
    y_b = jax.block_until_ready(gaussian_noise(x, std=0.1, seed=999))
    assert float(jnp.max(jnp.abs(y_b - y))) > 0.0

    # Eval mode: identity.
    y_eval = jax.block_until_ready(gaussian_noise(x, training=False))
    assert bool(jnp.all(y_eval == x))

    # Multi-block grid path with a partial trailing block (forced small blocks).
    x2 = jax.random.normal(jax.random.PRNGKey(1), (13 * 512,), jnp.float32)
    y2 = jax.block_until_ready(
        gaussian_noise(x2, std=0.1, seed=7, target_block_bytes=16 * 1024))
    assert y2.shape == x2.shape
    assert 0.05 < float(jnp.std(y2 - x2)) < 0.2

    # Ragged size: 512-aligned prefix through the kernel + tiny jnp tail.
    x3 = jax.random.normal(jax.random.PRNGKey(2), (7, 9, 11), jnp.float32)
    y3 = jax.block_until_ready(gaussian_noise(x3, std=0.1, seed=3))
    assert y3.shape == x3.shape
    assert float(jnp.max(jnp.abs(y3 - x3))) > 0.0

    # bf16 path (sublane tile of 16).
    xh = jax.random.normal(jax.random.PRNGKey(3), (4, 8, 32),
                           jnp.float32).astype(jnp.bfloat16)
    yh = jax.block_until_ready(gaussian_noise(xh, std=0.1, seed=5))
    assert yh.shape == xh.shape and yh.dtype == xh.dtype

    print("KERNEL_OK")
</pallas_src>

<mosaic_0001>
module attributes {stable_mosaic.version = 11 : i64} {
  func.func @kernel(%arg0: i32, %arg1: memref<1xi32, #tpu.memory_space<smem>>, %arg2: memref<4x256xi32, #tpu.memory_space<vmem>>, %arg3: memref<4x512xf32, #tpu.memory_space<vmem>>, %arg4: memref<4x512xf32, #tpu.memory_space<vmem>>) attributes {dimension_semantics = [#tpu.dimension_semantics<parallel>], iteration_bounds = array<i64: 1>, scalar_prefetch = 1 : i64, scratch_operands = 0 : i64, tpu.core_type = #tpu.core_type<tc>, window_params = [{pipeline_mode = #tpu.pipeline_mode<synchronous>, transform_indices = @transform_0, window_bounds = array<i64: 4, 256>}, {transform_indices = @transform_1, window_bounds = array<i64: 4, 512>}, {transform_indices = @transform_2, window_bounds = array<i64: 4, 512>}]} {
    %c1024_i32 = arith.constant 1024 : i32
    %0 = arith.muli %arg0, %c1024_i32 : i32
    %c0 = arith.constant 0 : index
    %1 = memref.load %arg1[%c0] : memref<1xi32, #tpu.memory_space<smem>>
    %c-1640531527_i32 = arith.constant -1640531527 : i32
    %2 = arith.muli %1, %c-1640531527_i32 : i32
    %3 = arith.addi %0, %2 : i32
    %c0_0 = arith.constant 0 : index
    %c0_1 = arith.constant 0 : index
    %4 = vector.load %arg2[%c0_0, %c0_1] : memref<4x256xi32, #tpu.memory_space<vmem>>, vector<4x256xi32>
    %5 = vector.broadcast %3 : i32 to vector<4x256xi32>
    %6 = arith.addi %4, %5 : vector<4x256xi32>
    %c16_i32 = arith.constant 16 : i32
    %7 = vector.broadcast %c16_i32 : i32 to vector<4x256xi32>
    %8 = arith.shrui %6, %7 : vector<4x256xi32>
    %9 = arith.xori %6, %8 : vector<4x256xi32>
    %c-2048144789_i32 = arith.constant -2048144789 : i32
    %10 = vector.broadcast %c-2048144789_i32 : i32 to vector<4x256xi32>
    %11 = arith.muli %9, %10 : vector<4x256xi32>
    %c13_i32 = arith.constant 13 : i32
    %12 = vector.broadcast %c13_i32 : i32 to vector<4x256xi32>
    %13 = arith.shrui %11, %12 : vector<4x256xi32>
    %14 = arith.xori %11, %13 : vector<4x256xi32>
    %c-1028477387_i32 = arith.constant -1028477387 : i32
    %15 = vector.broadcast %c-1028477387_i32 : i32 to vector<4x256xi32>
    %16 = arith.muli %14, %15 : vector<4x256xi32>
    %c16_i32_2 = arith.constant 16 : i32
    %17 = vector.broadcast %c16_i32_2 : i32 to vector<4x256xi32>
    %18 = arith.shrui %16, %17 : vector<4x256xi32>
    %19 = arith.xori %16, %18 : vector<4x256xi32>
    %c9_i32 = arith.constant 9 : i32
    %20 = vector.broadcast %c9_i32 : i32 to vector<4x256xi32>
    %21 = arith.shrui %19, %20 : vector<4x256xi32>
    %22 = arith.sitofp %21 : vector<4x256xi32> to vector<4x256xf32>
    %cst = arith.constant 1.000000e+00 : f32
    %23 = vector.broadcast %cst : f32 to vector<4x256xf32>
    %24 = arith.addf %22, %23 : vector<4x256xf32>
    %cst_3 = arith.constant 1.1920929E-7 : f32
    %25 = vector.broadcast %cst_3 : f32 to vector<4x256xf32>
    %26 = arith.mulf %24, %25 : vector<4x256xf32>
    %27 = math.log %26 : vector<4x256xf32>
    %cst_4 = arith.constant -2.000000e+00 : f32
    %28 = vector.broadcast %cst_4 : f32 to vector<4x256xf32>
    %29 = arith.mulf %28, %27 : vector<4x256xf32>
    %30 = math.sqrt %29 : vector<4x256xf32>
    %cst_5 = arith.constant 1.000000e-01 : f32
    %31 = vector.broadcast %cst_5 : f32 to vector<4x256xf32>
    %32 = arith.mulf %30, %31 : vector<4x256xf32>
    %c255_i32 = arith.constant 255 : i32
    %33 = vector.broadcast %c255_i32 : i32 to vector<4x256xi32>
    %34 = arith.andi %19, %33 : vector<4x256xi32>
    %35 = arith.sitofp %34 : vector<4x256xi32> to vector<4x256xf32>
    %cst_6 = arith.constant 0.0245436933 : f32
    %36 = vector.broadcast %cst_6 : f32 to vector<4x256xf32>
    %37 = arith.mulf %35, %36 : vector<4x256xf32>
    %38 = math.cos %37 : vector<4x256xf32>
    %39 = arith.mulf %38, %38 : vector<4x256xf32>
    %cst_7 = arith.constant 1.000000e+00 : f32
    %40 = vector.broadcast %cst_7 : f32 to vector<4x256xf32>
    %41 = arith.subf %40, %39 : vector<4x256xf32>
    %cst_8 = arith.constant 0.000000e+00 : f32
    %42 = vector.broadcast %cst_8 : f32 to vector<4x256xf32>
    %43 = arith.maximumf %41, %42 : vector<4x256xf32>
    %44 = math.sqrt %43 : vector<4x256xf32>
    %c256_i32 = arith.constant 256 : i32
    %45 = vector.broadcast %c256_i32 : i32 to vector<4x256xi32>
    %46 = arith.andi %19, %45 : vector<4x256xi32>
    %c0_i32 = arith.constant 0 : i32
    %47 = vector.broadcast %c0_i32 : i32 to vector<4x256xi32>
    %48 = arith.cmpi ne, %46, %47 : vector<4x256xi32>
    %cst_9 = arith.constant 0.000000e+00 : f32
    %49 = vector.broadcast %cst_9 : f32 to vector<4x256xf32>
    %50 = arith.subf %49, %44 : vector<4x256xf32>
    %51 = arith.select %48, %44, %50 : vector<4x256xi1>, vector<4x256xf32>
    %52 = arith.mulf %32, %38 : vector<4x256xf32>
    %cst_10 = arith.constant 0.000000e+00 : f32
    %53 = vector.broadcast %cst_10 : f32 to vector<4x256xf32>
    %54 = arith.addf %52, %53 : vector<4x256xf32>
    %55 = arith.mulf %32, %51 : vector<4x256xf32>
    %cst_11 = arith.constant 0.000000e+00 : f32
    %56 = vector.broadcast %cst_11 : f32 to vector<4x256xf32>
    %57 = arith.addf %55, %56 : vector<4x256xf32>
    %c0_12 = arith.constant 0 : index
    %c0_13 = arith.constant 0 : index
    %58 = vector.load %arg3[%c0_12, %c0_13] : memref<4x512xf32, #tpu.memory_space<vmem>>, vector<4x256xf32>
    %59 = arith.addf %58, %54 : vector<4x256xf32>
    %c0_14 = arith.constant 0 : index
    %c0_15 = arith.constant 0 : index
    %60 = vector.load %arg4[%c0_14, %c0_15] : memref<4x512xf32, #tpu.memory_space<vmem>>, vector<4x256xf32>
    tpu.vector_store %arg4[%c0_14, %c0_15], %59 {strides = array<i32>} : memref<4x512xf32, #tpu.memory_space<vmem>>, vector<4x256xf32>,
    %c0_16 = arith.constant 0 : index
    %c256 = arith.constant 256 : index
    %61 = vector.load %arg3[%c0_16, %c256] : memref<4x512xf32, #tpu.memory_space<vmem>>, vector<4x256xf32>
    %62 = arith.addf %61, %57 : vector<4x256xf32>
    %c0_17 = arith.constant 0 : index
    %c256_18 = arith.constant 256 : index
    %63 = vector.load %arg4[%c0_17, %c256_18] : memref<4x512xf32, #tpu.memory_space<vmem>>, vector<4x256xf32>
    tpu.vector_store %arg4[%c0_17, %c256_18], %62 {strides = array<i32>} : memref<4x512xf32, #tpu.memory_space<vmem>>, vector<4x256xf32>,
    return
  }
  func.func @transform_0(%arg0: i32, %arg1: memref<1xi32, #tpu.memory_space<smem>>) -> (i32, i32) {
    %c0_i32 = arith.constant 0 : i32
    %c0_i32_0 = arith.constant 0 : i32
    %c0_i32_1 = arith.constant 0 : i32
    return %c0_i32, %c0_i32_0 : i32, i32
  }
  func.func @transform_1(%arg0: i32, %arg1: memref<1xi32, #tpu.memory_space<smem>>) -> (i32, i32) {
    %c0_i32 = arith.constant 0 : i32
    %c0_i32_0 = arith.constant 0 : i32
    return %arg0, %c0_i32 : i32, i32
  }
  func.func @transform_2(%arg0: i32, %arg1: memref<1xi32, #tpu.memory_space<smem>>) -> (i32, i32) {
    %c0_i32 = arith.constant 0 : i32
    %c0_i32_0 = arith.constant 0 : i32
    return %arg0, %c0_i32 : i32, i32
  }
}

</mosaic_0001>

<llo_original>
// kernel: tpu_custom_call.1
$region0: #{tpu_custom_call.1}
  #allocation0 [shape = 'u32[]', space=smem, size = 0x4, offset = 0x4, fixed_abs, tag = 'smem constant byte address 0x4 - core index']
  #allocation1 [shape = 'u32[144,128]{1,0:T(1,128)}', space=vmem, size = 0x12000, scoped, tag = 'internal scratch']
  #allocation2 [shape = 's32[1]{0}', space=sflag, size = 0x4, scoped, tag = 'scoped memory for tpu_custom_call.1']
  #allocation3 [shape = 's32[1]{0:T(128)S(6)}', space=smem, size = 0x200, scoped, tag = 'prefetched SMEM operand 0']
  %s0 = inlined_call_operand.<no memory space> [shape: s32[1], index: 0, kind: input, shape index: {}]
  %s1 = inlined_call_operand.hbm [shape: u32[4,256], index: 1, kind: input, shape index: {}]
  %s2 = inlined_call_operand.hbm [shape: f32[4,512], index: 2, kind: input, shape index: {}]
  %s3 = inlined_call_operand.hbm [shape: f32[4,512], index: 3, kind: output, shape index: {}]
  %s4 = sld [smem:[#allocation0]]
  $region26: #{tpu_custom_call.1} parent=0
    _
  %s6 = ssub.s32 1, %s4
  %s7 = scalar_select 0, %s6, %s4
  %8 = sst [smem:[#allocation3]] %s0
  $region1: #{tpu_custom_call.1} parent=0
    #allocation4 [shape = 'u8[4096]{0}', space=vmem, size = 0x1000, scoped, tag = 'input window, operand 1, single buffered']
    #allocation5 [shape = 's32[1]{0}', space=sflag, size = 0x4, scoped, tag = 'scoped memory for tpu_custom_call.1']
    #allocation6 [shape = 's32[1]{0}', space=sflag, size = 0x4, scoped, tag = 'scoped memory for tpu_custom_call.1']
    #allocation7 [shape = 'u8[8192]{0}', space=vmem, size = 0x2000, scoped, tag = 'input window, operand 2, single buffered']
    #allocation8 [shape = 's32[1]{0}', space=sflag, size = 0x4, scoped, tag = 'scoped memory for tpu_custom_call.1']
    #allocation9 [shape = 'u8[8192]{0}', space=vmem, size = 0x2000, scoped, tag = 'output window, operand 0, single buffered']
    %9 = vsyncpa [#allocation5], 0
    %10 = vsyncpa [#allocation8], 0
    %11 = vsyncpa [#allocation6], 0
    // Predicated region
    $region2: #{tpu_custom_call.1} parent=1 // pred_check
      _
    $region3: #{tpu_custom_call.1} parent=1 // pred_check_branch
      %13 = sbr.rel (0) target = $region5
    $region4: #{tpu_custom_call.1} parent=1 // pred_region
      %s15 = ssub.s32 128, 128
      %16 = vsyncadd [#allocation5], %s15
      %s18 = sshll.u32 [#allocation4], 4
      %s19 = int_to_ptr.vmem [resolvable:$true] %s18
      %21 = dma.hbm_to_vmem [thread:$0]  %s1, 128, %s19, [#allocation5]
    $region5: #{tpu_custom_call.1} parent=1 // pred_fallthru
      _
    // Predicated region
    $region6: #{tpu_custom_call.1} parent=1 // pred_check
      _
    $region7: #{tpu_custom_call.1} parent=1 // pred_check_branch
      %23 = sbr.rel (0) target = $region9
    $region8: #{tpu_custom_call.1} parent=1 // pred_region
      %s25 = ssub.s32 256, 256
      %26 = vsyncadd [#allocation8], %s25
      %s28 = sshll.u32 [#allocation7], 4
      %s29 = int_to_ptr.vmem [resolvable:$true] %s28
      %31 = dma.hbm_to_vmem [thread:$0]  %s2, 256, %s29, [#allocation8]
    $region9: #{tpu_custom_call.1} parent=1 // pred_fallthru
      _
    // Predicated region
    $region10: #{tpu_custom_call.1} parent=1 // pred_check
      _
    $region11: #{tpu_custom_call.1} parent=1 // pred_check_branch
      %33 = sbr.rel (0) target = $region13
    $region12: #{tpu_custom_call.1} parent=1 // pred_region
      %34 = dma.done [#allocation5], 128
    $region13: #{tpu_custom_call.1} parent=1 // pred_fallthru
      _
    // Predicated region
    $region14: #{tpu_custom_call.1} parent=1 // pred_check
      _
    $region15: #{tpu_custom_call.1} parent=1 // pred_check_branch
      %36 = sbr.rel (0) target = $region17
    $region16: #{tpu_custom_call.1} parent=1 // pred_region
      %37 = dma.done [#allocation8], 256
    $region17: #{tpu_custom_call.1} parent=1 // pred_fallthru
      _
    %s38 = smul.u32 0, 1024
    %s39 = sld [smem:[#allocation3]]
    %s40 = smul.u32 %s39, 2654435769
    %s41 = sadd.s32 %s38, %s40
    %v42 = vld [vmem:[#allocation4] sm:$0xff]
    %v43 = vstv %s41
    %v44 = vadd.s32 %v42, %v43
    %v45 = vshrl.u32 %v44, 16
    %v46 = vxor.u32 %v44, %v45
    %v47 = vmul.u32 %v46, 2246822507
    %v48 = vshrl.u32 %v47, 13
    %v49 = vxor.u32 %v47, %v48
    %v50 = vmul.u32 %v49, 3266489909
    %v51 = vshrl.u32 %v50, 16
    %v52 = vxor.u32 %v50, %v51
    %v53 = vshrl.u32 %v52, 9
    %v54 = vcvt.s32.f32 %v53
    %v55 = vadd.f32 %v54, 1.0
    %v56 = vmul.f32 %v55, 1.1920929e-07
    %v57 = vlog2.pop %v56
    %v58 = vmul.f32 %v57, 0.6931472
    %v59 = vmul.f32 %v58, -2.0
    %v60 = vrsqrt.pop %v59
    %v61 = vmul.f32 %v59, %v60
    %vm62 = vcmp.eq.f32.partialorder %v59, inf
    %v63 = vsel %vm62, %v59, %v61
    %vm64 = vcmp.eq.f32.partialorder %v59, 0.0
    %v65 = vand.u32 %v59, 2147483648
    %v66 = vsel %vm64, %v65, %v63
    %v67 = vmul.f32 %v66, 0.1
    %v68 = vand.u32 %v52, 255
    %v69 = vcvt.s32.f32 %v68
    %v70 = vmul.f32 %v69, 0.024543693
    %v71 = vand.u32 2147483647, %v70
    %vm72 = vcmp.le.f32.partialorder %v71, 0.7853982
    %vm73 = vcmp.lt.s32.totalorder %v70, 0
    %v74 = vand.u32 %v70, 2139095040
    %v75 = vshrl.u32 %v74, 23
    %v76 = vsub.s32 %v75, 127
    %v77 = vand.u32 2147483647, %v70
    %v78 = vand.u32 %v77, 8388607
    %v79 = vor.u32 %v78, 8388608
    %v80 = vsub.s32 0, %v79
    %v81 = vadd.s32 %v76, 1
    %vm82 = vcmp.gt.s32.totalorder %v81, 0
    %v83 = vsel %vm82, %v81, 0
    %v84 = vshrl.u32 %v83, 5
    %v85 = vand.u32 %v83, 31
    %v86 = vsub.s32 32, %v85
    %v87 = vshrl.u32 683565275, %v86
    %v88 = vshll.u32 683565275, %v85
    %v89 = vshrl.u32 2475754826, %v86
    %v90 = vor.u32 %v88, %v89
    %v91 = vshll.u32 2475754826, %v85
    %v92 = vshrl.u32 2131351028, %v86
    %v93 = vor.u32 %v91, %v92
    %v94 = vshll.u32 2131351028, %v85
    %v95 = vshrl.u32 2102212464, %v86
    %v96 = vor.u32 %v94, %v95
    %v97 = vshll.u32 2102212464, %v85
    %v98 = vshrl.u32 920167782, %v86
    %v99 = vor.u32 %v97, %v98
    %v100 = vshll.u32 920167782, %v85
    %v101 = vshrl.u32 1326507024, %v86
    %v102 = vor.u32 %v100, %v101
    %vm103 = vcmp.lt.s32.totalorder %v84, 1
    %vm104 = vcmp.lt.s32.totalorder %v84, 2
    %vm105 = vcmp.lt.s32.totalorder %v84, 3
    %vm106 = vcmp.lt.s32.totalorder %v84, 4
    %v107 = vsel %vm103, %v87, %v90
    %v108 = vsel %vm106, %v96, 2102212464
    %v109 = vsel %vm105, %v93, %v108
    %v110 = vsel %vm104, %v107, %v109
    %v111 = vsel %vm103, %v90, %v93
    %v112 = vsel %vm106, %v99, 920167782
    %v113 = vsel %vm105, %v96, %v112
    %v114 = vsel %vm104, %v111, %v113
    %v115 = vsel %vm103, %v93, %v96
    %v116 = vsel %vm106, %v102, 1326507024
    %v117 = vsel %vm105, %v99, %v116
    %v118 = vsel %vm104, %v115, %v117
    %v119 = vshll.u32 %v79, 8
    %v120 = vmul.u32.u64.compose %v119, %v118
    %v121 = vextract.low.u32 %v120
    %v122 = vextract.high.u32 %v120
    %v123 = vmul.u32.u64.compose %v119, %v114
    %v124 = vextract.low.u32 %v123
    %v125 = vextract.high.u32 %v123
    %v126 = vmul.u32 %v119, %v110
    %v127 = vadd.s32 %v122, %v124
    %vm128 = vc.u32 %v122, %v124
    %v129 = vadd.s32 %v125, 1
    %v130 = vsel %vm128, %v129, %v125
    %v131 = vadd.s32 %v126, %v130
    %v132 = vadd.s32 %v131, 536870912
    %v133 = vshrl.u32 %v132, 30
    %v134 = vshll.u32 %v133, 30
    %v135 = vsub.s32 %v131, %v134
    %vm136 = vcmp.lt.s32.totalorder %v135, 0
    %v137 = vsub.s32 0, %v135
    %v138 = vsel %vm136, %v137, %v135
    %v139 = vclz %v138
    %v140 = vsub.s32 %v139, 2
    %vm141 = vcmp.gt.s32.totalorder 0, %v140
    %v142 = vsel %vm141, 0, %v140
    %v143 = vsub.s32 32, %v142
    %v144 = vshll.u32 %v135, %v142
    %v145 = vshrl.u32 %v127, %v143
    %v146 = vor.u32 %v144, %v145
    %v147 = vsub.s32 4294967266, %v142
    %v148 = vadd.s32 %v147, 127
    %v149 = vshll.u32 %v148, 23
    %v150 = vor.u32 4788187, %v149
    %v151 = vand.u32 2147483647, %v150
    %v153 = vcvt.s32.f32 %v146
    %v154 = vmul.f32 %v153, %v151
    %v155 = vxor.u32 %v154, 2147483648
    %v156 = vsel %vm73, %v155, %v154
    %v157 = vsub.s32 4, %v133
    %v158 = vsel %vm73, %v157, %v133
    %v159 = vsel %vm72, %v70, %v156
    %v160 = vsel %vm72, 0, %v158
    %v161 = vcosq.f32.pop %v159
    %v162 = vsinq.f32.pop %v159
    %vm163 = vweird.f32 %v70
    %v164 = vand.u32 %v160, 3
    %vm165 = vcmp.lt.s32.totalorder %v164, 2
    %vm166 = vcmp.eq.s32.totalorder %v164, 0
    %v167 = vxor.u32 %v162, 2147483648
    %v168 = vsel %vm166, %v161, %v167
    %vm169 = vcmp.eq.s32.totalorder %v164, 2
    %v170 = vxor.u32 %v161, 2147483648
    %v171 = vsel %vm169, %v170, %v162
    %v172 = vsel %vm165, %v168, %v171
    %v173 = vsel %vm163, nan, %v172
    %v174 = vmul.f32 %v173, %v173
    %v175 = vsub.f32 1.0, %v174
    %v176 = vmax.f32 %v175, 0.0
    %v177 = vrsqrt.pop %v176
    %v178 = vmul.f32 %v176, %v177
    %vm179 = vcmp.eq.f32.partialorder %v176, inf
    %v180 = vsel %vm179, %v176, %v178
    %vm181 = vcmp.eq.f32.partialorder %v176, 0.0
    %v182 = vand.u32 %v176, 2147483648
    %v183 = vsel %vm181, %v182, %v180
    %v184 = vand.u32 %v52, 256
    %vm185 = vcmp.ne.s32.totalorder %v184, 0
    %v186 = vsub.f32 0.0, %v183
    %v187 = vsel %vm185, %v183, %v186
    %v188 = vmul.f32 %v67, %v173
    %v189 = vadd.f32 %v188, 0.0
    %v190 = vmul.f32 %v67, %v187
    %v191 = vadd.f32 %v190, 0.0
    %v192 = vld [vmem:[#allocation7] sm:$0xff]
    %v193 = vadd.f32 %v192, %v189
    %194 = vst [vmem:[#allocation9] sm:$0xff] %v193
    %v195 = vld [vmem:[#allocation7 + $0x8] sm:$0xff]
    %v196 = vadd.f32 %v195, %v191
    %197 = vst [vmem:[#allocation9 + $0x8] sm:$0xff] %v196
    // Predicated region
    $region18: #{tpu_custom_call.1} parent=1 // pred_check
      _
    $region19: #{tpu_custom_call.1} parent=1 // pred_check_branch
      %199 = sbr.rel (0) target = $region21
    $region20: #{tpu_custom_call.1} parent=1 // pred_region
      %s201 = ssub.s32 256, 256
      %202 = vsyncadd [#allocation6], %s201
      %s204 = sshll.u32 [#allocation9], 4
      %s205 = int_to_ptr.vmem [resolvable:$true] %s204
      %207 = dma.vmem_to_hbm [thread:$0]  %s205, 256, %s3, [#allocation6]
    $region21: #{tpu_custom_call.1} parent=1 // pred_fallthru
      _
    // Predicated region
    $region22: #{tpu_custom_call.1} parent=1 // pred_check
      _
    $region23: #{tpu_custom_call.1} parent=1 // pred_check_branch
      %209 = sbr.rel (0) target = $region25
    $region24: #{tpu_custom_call.1} parent=1 // pred_region
      %210 = dma.done [#allocation6], 256
    $region25: #{tpu_custom_call.1} parent=1 // pred_fallthru
      _
    %211 = vsyncpa [#allocation5], 1
    %212 = vsyncpa [#allocation8], 1
    %213 = vsyncpa [#allocation6], 1

</llo_original>
